<compile_context>
chip_gen: v7x
topology: tpu7x:2x2x1
jax: 0.10.0
libtpu: 0.0.40
codegen_flags: <defaults>
</compile_context>

<pallas_src>
import jax
import jax.numpy as jnp
import numpy as np
from jax.experimental import pallas as pl
from jax.experimental.pallas import tpu as pltpu


def _round_up(a, b):
    return (a + b - 1) // b * b


def final_layer_kernel(x_ref, shift_ref, scale1_ref, w_ref, b_ref, o_ref):
    # ---- LayerNorm (elementwise_affine=False, eps=1e-6); statistics in f32 ----
    x = x_ref[0].astype(jnp.float32)                       # (TN, H)
    mean = jnp.mean(x, axis=-1, keepdims=True)
    xc = x - mean
    var = jnp.mean(xc * xc, axis=-1, keepdims=True)
    xn = xc * jax.lax.rsqrt(var + 1e-6)                    # rsqrt -> EUP slot

    # ---- adaLN modulation; shift / (1 + scale) precomputed per batch in the wrapper ----
    # TODO(synk): on v7x, if the bundle shows VALU as the critical slot, do this
    # multiply-add (and the cast) in bf16 to halve the VPU passes.
    mod = xn * scale1_ref[0] + shift_ref[0]                # (TN, H), row broadcast

    # ---- final projection: bf16 operands, f32 MXU accumulation, f32 bias add ----
    out = jnp.dot(mod.astype(w_ref.dtype), w_ref[...],
                  preferred_element_type=jnp.float32) + b_ref[...]
    o_ref[0] = out.astype(o_ref.dtype)                     # (TN, out_dim) store, no padding


def prepare_final_layer_params(w_ada, b_ada, w_lin, b_lin, *, matmul_dtype=jnp.bfloat16):
    """One-time parameter prep (hoisted out of the per-forward wrapper).

    Weights are stored (in, out) so the kernel computes x @ W + b.
    """
    return dict(
        w_ada=jnp.asarray(w_ada, jnp.float32),                        # (H, 2H)
        b_ada=jnp.asarray(b_ada, jnp.float32),                        # (2H,)
        w_lin=jnp.asarray(w_lin, jnp.float32).astype(matmul_dtype),   # (H, out_dim) bf16
        b_lin=jnp.asarray(b_lin, jnp.float32).reshape(1, -1),         # (1, out_dim) f32
    )


def final_layer(x, c, params, *, tn=512, activation_dtype=jnp.bfloat16):
    """x: (B, N, H) tokens; c: (B, H) conditioning; params from prepare_final_layer_params."""
    B, N, H = x.shape
    w_lin, b_lin = params["w_lin"], params["b_lin"]
    out_dim = w_lin.shape[1]

    # ---- adaLN branch hoisted out of the kernel (tiny (B,H) x (H,2H) matmul) ----
    cf = c.astype(jnp.float32)
    silu = cf * jax.nn.sigmoid(cf)
    ada = silu @ params["w_ada"] + params["b_ada"]          # (B, 2H)
    shift = ada[:, :H].reshape(B, 1, H)
    scale1 = (1.0 + ada[:, H:]).reshape(B, 1, H)

    # ---- bf16 activations: halves the dominant HBM stream; no-op if x already bf16 ----
    if x.dtype != activation_dtype:
        x = x.astype(activation_dtype)

    # ---- token tiling over N (tn is the main tuning knob) ----
    tn = _round_up(min(tn, _round_up(N, 8)), 8)
    n_pad = _round_up(N, tn)
    if n_pad != N:
        # Padded rows see var=0 -> rsqrt(eps); values stay finite and are sliced off below.
        x = jnp.pad(x, ((0, 0), (0, n_pad - N), (0, 0)))

    grid = (B, n_pad // tn)

    flops = 2 * B * n_pad * H * out_dim + 8 * B * n_pad * H
    bytes_accessed = (x.size * x.dtype.itemsize
                      + B * n_pad * out_dim * x.dtype.itemsize
                      + w_lin.size * w_lin.dtype.itemsize
                      + b_lin.size * 4
                      + 2 * B * H * 4)

    out = pl.pallas_call(
        final_layer_kernel,
        out_shape=jax.ShapeDtypeStruct((B, n_pad, out_dim), x.dtype),   # bf16 output
        grid_spec=pltpu.PrefetchScalarGridSpec(
            num_scalar_prefetch=0,
            grid=grid,
            in_specs=[
                pl.BlockSpec((1, tn, H), lambda b, t: (b, t, 0)),       # x token tile (bf16)
                pl.BlockSpec((1, 1, H), lambda b, t: (b, 0, 0)),        # shift (f32)
                pl.BlockSpec((1, 1, H), lambda b, t: (b, 0, 0)),        # 1 + scale (f32)
                # Constant-index weight/bias blocks.
                # TODO(synk): on VMEM-tight v7x configs add pipeline_mode=pl.Buffered(1)
                # here to single-buffer them (their index_map is constant); left at the
                # default buffering to keep lowering robust across jax versions.
                pl.BlockSpec((H, out_dim), lambda b, t: (0, 0)),        # W_lin (bf16)
                pl.BlockSpec((1, out_dim), lambda b, t: (0, 0)),        # b_lin (f32)
            ],
            out_specs=pl.BlockSpec((1, tn, out_dim), lambda b, t: (b, t, 0)),
        ),
        compiler_params=pltpu.CompilerParams(
            dimension_semantics=("parallel", "parallel"),
            vmem_limit_bytes=32 * 1024 * 1024,
        ),
        cost_estimate=pl.CostEstimate(
            flops=flops, transcendentals=B * n_pad, bytes_accessed=bytes_accessed),
    )(x, shift, scale1, w_lin, b_lin)

    return out if n_pad == N else out[:, :N, :]


def final_layer_ref(x, c, w_ada, b_ada, w_lin, b_lin):
    # Pure-JAX reference mirroring the PyTorch module (f32 throughout).
    silu = c * jax.nn.sigmoid(c)
    ada = silu @ w_ada + b_ada
    H = x.shape[-1]
    shift, scale = ada[:, :H], ada[:, H:]
    mean = jnp.mean(x, axis=-1, keepdims=True)
    var = jnp.mean((x - mean) ** 2, axis=-1, keepdims=True)
    xn = (x - mean) / jnp.sqrt(var + 1e-6)
    mod = xn * (1 + scale[:, None, :]) + shift[:, None, :]
    return mod @ w_lin + b_lin


if __name__ == "__main__":
    # Small shapes consistent with FinalLayer(hidden_size, patch_size, out_channels).
    hidden_size = 32
    patch_size = 2
    out_channels = 4
    out_dim = patch_size ** 3 * out_channels    # 32

    B, N = 2, 8

    key = jax.random.PRNGKey(0)
    k_x, k_c, k_wa, k_ba, k_wl, k_bl = jax.random.split(key, 6)

    x = jax.random.normal(k_x, (B, N, hidden_size), dtype=jnp.float32)
    c = jax.random.normal(k_c, (B, hidden_size), dtype=jnp.float32)

    # Parameters stored transposed vs. PyTorch: W has shape (in, out).
    w_ada = jax.random.normal(k_wa, (hidden_size, 2 * hidden_size), dtype=jnp.float32) * 0.02
    b_ada = jax.random.normal(k_ba, (2 * hidden_size,), dtype=jnp.float32) * 0.02
    w_lin = jax.random.normal(k_wl, (hidden_size, out_dim), dtype=jnp.float32) * 0.02
    b_lin = jax.random.normal(k_bl, (out_dim,), dtype=jnp.float32) * 0.02

    # One-time parameter prep (hoisted, per the review).
    params = prepare_final_layer_params(w_ada, b_ada, w_lin, b_lin)

    out = jax.block_until_ready(final_layer(x, c, params))
    ref = final_layer_ref(x, c, w_ada, b_ada, w_lin, b_lin)

    # bf16 activations + bf16 matmul operands (f32 accumulation) vs. f32 reference.
    np.testing.assert_allclose(
        np.asarray(out.astype(jnp.float32)), np.asarray(ref), rtol=5e-2, atol=1e-2)

    print("KERNEL_OK")
</pallas_src>

<mosaic_0001>
module attributes {stable_mosaic.version = 11 : i64} {
  func.func @final_layer_kernel(%arg0: i32, %arg1: i32, %arg2: memref<1x8x32xbf16, #tpu.memory_space<vmem>>, %arg3: memref<1x1x32xf32, #tpu.memory_space<vmem>>, %arg4: memref<1x1x32xf32, #tpu.memory_space<vmem>>, %arg5: memref<32x32xbf16, #tpu.memory_space<vmem>>, %arg6: memref<1x32xf32, #tpu.memory_space<vmem>>, %arg7: memref<1x8x32xbf16, #tpu.memory_space<vmem>>) attributes {dimension_semantics = [#tpu.dimension_semantics<parallel>, #tpu.dimension_semantics<parallel>], iteration_bounds = array<i64: 2, 1>, scalar_prefetch = 0 : i64, scratch_operands = 0 : i64, tpu.core_type = #tpu.core_type<tc>, window_params = [{transform_indices = @transform_0, window_bounds = array<i64: 1, 8, 32>}, {transform_indices = @transform_1, window_bounds = array<i64: 1, 1, 32>}, {transform_indices = @transform_2, window_bounds = array<i64: 1, 1, 32>}, {pipeline_mode = #tpu.pipeline_mode<synchronous>, transform_indices = @transform_3, window_bounds = array<i64: 32, 32>}, {pipeline_mode = #tpu.pipeline_mode<synchronous>, transform_indices = @transform_4, window_bounds = array<i64: 1, 32>}, {transform_indices = @transform_5, window_bounds = array<i64: 1, 8, 32>}]} {
    %c0 = arith.constant 0 : index
    %c0_0 = arith.constant 0 : index
    %c0_1 = arith.constant 0 : index
    %0 = vector.load %arg2[%c0, %c0_0, %c0_1] : memref<1x8x32xbf16, #tpu.memory_space<vmem>>, vector<1x8x32xbf16>
    %1 = vector.shape_cast %0 : vector<1x8x32xbf16> to vector<8x32xbf16>
    %2 = arith.extf %1 : vector<8x32xbf16> to vector<8x32xf32>
    %cst = arith.constant dense<0.000000e+00> : vector<8xf32>
    %3 = vector.multi_reduction <add>, %2, %cst [1] : vector<8x32xf32> to vector<8xf32>
    %4 = vector.shape_cast %3 : vector<8xf32> to vector<8x1xf32>
    %cst_2 = arith.constant 3.200000e+01 : f32
    %5 = vector.broadcast %cst_2 : f32 to vector<8x1xf32>
    %6 = arith.divf %4, %5 : vector<8x1xf32>
    %7 = vector.broadcast %6 : vector<8x1xf32> to vector<8x32xf32>
    %8 = arith.subf %2, %7 : vector<8x32xf32>
    %9 = arith.mulf %8, %8 : vector<8x32xf32>
    %cst_3 = arith.constant dense<0.000000e+00> : vector<8xf32>
    %10 = vector.multi_reduction <add>, %9, %cst_3 [1] : vector<8x32xf32> to vector<8xf32>
    %11 = vector.shape_cast %10 : vector<8xf32> to vector<8x1xf32>
    %cst_4 = arith.constant 3.200000e+01 : f32
    %12 = vector.broadcast %cst_4 : f32 to vector<8x1xf32>
    %13 = arith.divf %11, %12 : vector<8x1xf32>
    %cst_5 = arith.constant 9.99999997E-7 : f32
    %14 = vector.broadcast %cst_5 : f32 to vector<8x1xf32>
    %15 = arith.addf %13, %14 : vector<8x1xf32>
    %16 = math.rsqrt %15 : vector<8x1xf32>
    %17 = vector.broadcast %16 : vector<8x1xf32> to vector<8x32xf32>
    %18 = arith.mulf %8, %17 : vector<8x32xf32>
    %c0_6 = arith.constant 0 : index
    %c0_7 = arith.constant 0 : index
    %c0_8 = arith.constant 0 : index
    %19 = vector.load %arg4[%c0_6, %c0_7, %c0_8] : memref<1x1x32xf32, #tpu.memory_space<vmem>>, vector<1x1x32xf32>
    %20 = vector.shape_cast %19 : vector<1x1x32xf32> to vector<1x32xf32>
    %21 = vector.broadcast %20 : vector<1x32xf32> to vector<8x32xf32>
    %22 = arith.mulf %18, %21 : vector<8x32xf32>
    %c0_9 = arith.constant 0 : index
    %c0_10 = arith.constant 0 : index
    %c0_11 = arith.constant 0 : index
    %23 = vector.load %arg3[%c0_9, %c0_10, %c0_11] : memref<1x1x32xf32, #tpu.memory_space<vmem>>, vector<1x1x32xf32>
    %24 = vector.shape_cast %23 : vector<1x1x32xf32> to vector<1x32xf32>
    %25 = vector.broadcast %24 : vector<1x32xf32> to vector<8x32xf32>
    %26 = arith.addf %22, %25 : vector<8x32xf32>
    %27 = arith.truncf %26 : vector<8x32xf32> to vector<8x32xbf16>
    %c0_12 = arith.constant 0 : index
    %c0_13 = arith.constant 0 : index
    %28 = vector.load %arg5[%c0_12, %c0_13] : memref<32x32xbf16, #tpu.memory_space<vmem>>, vector<32x32xbf16>
    %cst_14 = arith.constant dense<0.000000e+00> : vector<8x32xf32>
    %29 = tpu.matmul %27, %28, %cst_14 {dimension_numbers = #tpu.dot_dimension_numbers<[1], [0], [0], [1], [0, 0, 1, 1], [], []>} : vector<8x32xbf16>, vector<32x32xbf16>, vector<8x32xf32> -> vector<8x32xf32>
    %c0_15 = arith.constant 0 : index
    %c0_16 = arith.constant 0 : index
    %30 = vector.load %arg6[%c0_15, %c0_16] : memref<1x32xf32, #tpu.memory_space<vmem>>, vector<1x32xf32>
    %31 = vector.broadcast %30 : vector<1x32xf32> to vector<8x32xf32>
    %32 = arith.addf %29, %31 : vector<8x32xf32>
    %33 = arith.truncf %32 : vector<8x32xf32> to vector<8x32xbf16>
    %c0_17 = arith.constant 0 : index
    %c0_18 = arith.constant 0 : index
    %c0_19 = arith.constant 0 : index
    %34 = vector.load %arg7[%c0_17, %c0_18, %c0_19] : memref<1x8x32xbf16, #tpu.memory_space<vmem>>, vector<1x8x32xbf16>
    %35 = vector.shape_cast %34 : vector<1x8x32xbf16> to vector<8x32xbf16>
    %36 = vector.shape_cast %33 : vector<8x32xbf16> to vector<1x8x32xbf16>
    tpu.vector_store %arg7[%c0_17, %c0_18, %c0_19], %36 {strides = array<i32>} : memref<1x8x32xbf16, #tpu.memory_space<vmem>>, vector<1x8x32xbf16>,
    return
  }
  func.func @transform_0(%arg0: i32, %arg1: i32) -> (i32, i32, i32) {
    %c0_i32 = arith.constant 0 : i32
    %c0_i32_0 = arith.constant 0 : i32
    return %arg0, %arg1, %c0_i32 : i32, i32, i32
  }
  func.func @transform_1(%arg0: i32, %arg1: i32) -> (i32, i32, i32) {
    %c0_i32 = arith.constant 0 : i32
    %c0_i32_0 = arith.constant 0 : i32
    %c0_i32_1 = arith.constant 0 : i32
    return %arg0, %c0_i32, %c0_i32_0 : i32, i32, i32
  }
  func.func @transform_2(%arg0: i32, %arg1: i32) -> (i32, i32, i32) {
    %c0_i32 = arith.constant 0 : i32
    %c0_i32_0 = arith.constant 0 : i32
    %c0_i32_1 = arith.constant 0 : i32
    return %arg0, %c0_i32, %c0_i32_0 : i32, i32, i32
  }
  func.func @transform_3(%arg0: i32, %arg1: i32) -> (i32, i32) {
    %c0_i32 = arith.constant 0 : i32
    %c0_i32_0 = arith.constant 0 : i32
    %c0_i32_1 = arith.constant 0 : i32
    return %c0_i32, %c0_i32_0 : i32, i32
  }
  func.func @transform_4(%arg0: i32, %arg1: i32) -> (i32, i32) {
    %c0_i32 = arith.constant 0 : i32
    %c0_i32_0 = arith.constant 0 : i32
    %c0_i32_1 = arith.constant 0 : i32
    return %c0_i32, %c0_i32_0 : i32, i32
  }
  func.func @transform_5(%arg0: i32, %arg1: i32) -> (i32, i32, i32) {
    %c0_i32 = arith.constant 0 : i32
    %c0_i32_0 = arith.constant 0 : i32
    return %arg0, %arg1, %c0_i32 : i32, i32, i32
  }
}

</mosaic_0001>

<llo_original>
// kernel: tpu_custom_call.1
$region0: #{tpu_custom_call.1}
  #allocation0 [shape = 'u32[]', space=smem, size = 0x4, offset = 0x4, fixed_abs, tag = 'smem constant byte address 0x4 - core index']
  #allocation1 [shape = 'u32[144,128]{1,0:T(1,128)}', space=vmem, size = 0x12000, scoped, tag = 'internal scratch']
  %s0 = inlined_call_operand.hbm [shape: bf16[2,8,32], index: 0, kind: input, shape index: {}]
  %s1 = inlined_call_operand.vmem [shape: f32[2,1,32], index: 1, kind: input, shape index: {}]
  %s2 = inlined_call_operand.vmem [shape: f32[2,1,32], index: 2, kind: input, shape index: {}]
  %s3 = inlined_call_operand.hbm [shape: bf16[32,32], index: 3, kind: input, shape index: {}]
  %s4 = inlined_call_operand.vmem [shape: f32[1,32], index: 4, kind: input, shape index: {}]
  %s5 = inlined_call_operand.hbm [shape: bf16[2,8,32], index: 5, kind: output, shape index: {}]
  %s6 = sld [smem:[#allocation0]]
  $region61: #{tpu_custom_call.1} parent=0
    _
  %s8 = ssub.s32 1, %s6
  %s9 = scalar_select 0, %s8, %s6
  $region1: #{tpu_custom_call.1} parent=0
    #allocation2 [shape = 'u8[4096]{0}', space=vmem, size = 0x1000, scoped, tag = 'input window, operand 0']
    #allocation3 [shape = 's32[2]{0}', space=sflag, size = 0x8, scoped, tag = 'scoped memory for tpu_custom_call.1']
    #allocation4 [shape = 's32[2]{0}', space=sflag, size = 0x8, scoped, tag = 'scoped memory for tpu_custom_call.1']
    #allocation5 [shape = 'u8[8192]{0}', space=vmem, size = 0x2000, scoped, tag = 'input window, operand 3, single buffered']
    #allocation6 [shape = 's32[1]{0}', space=sflag, size = 0x4, scoped, tag = 'scoped memory for tpu_custom_call.1']
    #allocation7 [shape = 'u8[4096]{0}', space=vmem, size = 0x1000, scoped, tag = 'output window, operand 0']
    %10 = vsyncpa [#allocation3], 0
    %s11 = scalar_lea.sflag [#allocation3], 1
    %12 = vsyncpa %s11, 0
    %13 = vsyncpa [#allocation6], 0
    %14 = vsyncpa [#allocation4], 0
    %s15 = scalar_lea.sflag [#allocation4], 1
    %16 = vsyncpa %s15, 0
    loop: start=0, step=1, limit=4
    $region2: #{tpu_custom_call.1} parent=1 // loop_pre_header
      _
    $region3: #{tpu_custom_call.1} parent=1 // loop_header
      %s18 = sphi 0, %s22
      %p19 = scmp.ge.s32.totalorder %s18, 4
      %s25 = sphi 0, %s37
      %s26 = sphi 0, %s33
      %s27 = sphi 0, %s25
      %s28 = sphi 0, %s26
      %s29 = sphi 0, %s27
      %s30 = sphi 0, %s28
      %s42 = sphi 0, %s44
      %s45 = sphi 0, %s42
      %s46 = sphi 0, %s45
      %s62 = sphi 0, %s46
      %s68 = sphi 0, %s70
      %s71 = sphi 0, %s68
      %s72 = sphi 0, %s71
      %s88 = sphi 0, %s72
      %s94 = sphi 0, %s96
      %s97 = sphi 0, %s94
      %s98 = sphi 0, %s97
      %s114 = sphi 0, %s98
      %s118 = sphi 0, %s118
      %s120 = sphi 0, %s118
      %s121 = sphi 0, %s120
      %s135 = sphi 0, %s121
      %s139 = sphi 0, %s139
      %s141 = sphi 0, %s139
      %s142 = sphi 0, %s141
      %s156 = sphi 0, %s142
      %s164 = sphi 0, %s166
      %s167 = sphi 0, %s164
      %s168 = sphi 0, %s167
      %s184 = sphi 0, %s168
    $region4: #{tpu_custom_call.1} parent=1 // loop_header_branch
      %21 = sbr.rel (%p19) target = $region8
    $region5: #{tpu_custom_call.1} parent=1 // loop_body
      %s23 = ssub.s32 %s18, 1
      %s24 = ssub.s32 %s18, 2
      %s31 = sadd.s32 1, %s26
      %p32 = scmp.ge.s32.totalorder %s31, 1
      %s33 = scalar_select %p32, 0, %s31
      %s34 = sadd.s32 1, %s25
      %s35 = scalar_select %p32, %s34, %s25
      %p36 = scmp.ge.s32.totalorder %s35, 2
      %s37 = scalar_select %p36, 0, %s35
      %s38 = ssub.s32 %s25, %s37
      %s39 = ssub.s32 %s26, %s33
      %s40 = sor.u32 %s38, %s39
      %p41 = scmp.eq.s32.totalorder %s40, 0
      %s43 = sadd.s32 %s42, 1
      %s44 = scalar_select %p41, %s42, %s43
      %p47 = pneg %p41
      %p48 = scmp.eq.s32.totalorder %s18, 1
      %p49 = por %p47, %p48
      %p50 = scmp.ne.s32.totalorder %s42, %s45
      %p51 = scmp.eq.s32.totalorder %s18, 0
      %p52 = por %p50, %p51
      %p53 = scmp.ne.s32.totalorder %s42, %s45
      %p54 = scmp.eq.s32.totalorder %s23, 1
      %p55 = por %p53, %p54
      %p56 = scmp.ne.s32.totalorder %s45, %s46
      %p57 = scmp.eq.s32.totalorder %s23, 0
      %p58 = por %p56, %p57
      %p59 = scmp.ne.s32.totalorder %s45, %s46
      %p60 = scmp.eq.s32.totalorder %s24, 1
      %p61 = por %p59, %p60
      %p63 = scmp.ne.s32.totalorder %s46, %s62
      %p64 = scmp.eq.s32.totalorder %s24, 0
      %p65 = por %p63, %p64
      %s66 = ssub.s32 %s25, %s37
      %p67 = scmp.eq.s32.totalorder %s66, 0
      %s69 = sadd.s32 %s68, 1
      %s70 = scalar_select %p67, %s68, %s69
      %p73 = pneg %p67
      %p74 = scmp.eq.s32.totalorder %s18, 1
      %p75 = por %p73, %p74
      %p76 = scmp.ne.s32.totalorder %s68, %s71
      %p77 = scmp.eq.s32.totalorder %s18, 0
      %p78 = por %p76, %p77
      %p79 = scmp.ne.s32.totalorder %s68, %s71
      %p80 = scmp.eq.s32.totalorder %s23, 1
      %p81 = por %p79, %p80
      %p82 = scmp.ne.s32.totalorder %s71, %s72
      %p83 = scmp.eq.s32.totalorder %s23, 0
      %p84 = por %p82, %p83
      %p85 = scmp.ne.s32.totalorder %s71, %s72
      %p86 = scmp.eq.s32.totalorder %s24, 1
      %p87 = por %p85, %p86
      %p89 = scmp.ne.s32.totalorder %s72, %s88
      %p90 = scmp.eq.s32.totalorder %s24, 0
      %p91 = por %p89, %p90
      %s92 = ssub.s32 %s25, %s37
      %p93 = scmp.eq.s32.totalorder %s92, 0
      %s95 = sadd.s32 %s94, 1
      %s96 = scalar_select %p93, %s94, %s95
      %p99 = pneg %p93
      %p100 = scmp.eq.s32.totalorder %s18, 1
      %p101 = por %p99, %p100
      %p102 = scmp.ne.s32.totalorder %s94, %s97
      %p103 = scmp.eq.s32.totalorder %s18, 0
      %p104 = por %p102, %p103
      %p105 = scmp.ne.s32.totalorder %s94, %s97
      %p106 = scmp.eq.s32.totalorder %s23, 1
      %p107 = por %p105, %p106
      %p108 = scmp.ne.s32.totalorder %s97, %s98
      %p109 = scmp.eq.s32.totalorder %s23, 0
      %p110 = por %p108, %p109
      %p111 = scmp.ne.s32.totalorder %s97, %s98
      %p112 = scmp.eq.s32.totalorder %s24, 1
      %p113 = por %p111, %p112
      %p115 = scmp.ne.s32.totalorder %s98, %s114
      %p116 = scmp.eq.s32.totalorder %s24, 0
      %p117 = por %p115, %p116
      %s119 = sadd.s32 %s118, 1
      %p122 = scmp.eq.s32.totalorder %s18, 1
      %p123 = scmp.ne.s32.totalorder %s118, %s120
      %p124 = scmp.eq.s32.totalorder %s18, 0
      %p125 = por %p123, %p124
      %p126 = scmp.ne.s32.totalorder %s118, %s120
      %p127 = scmp.eq.s32.totalorder %s23, 1
      %p128 = por %p126, %p127
      %p129 = scmp.ne.s32.totalorder %s120, %s121
      %p130 = scmp.eq.s32.totalorder %s23, 0
      %p131 = por %p129, %p130
      %p132 = scmp.ne.s32.totalorder %s120, %s121
      %p133 = scmp.eq.s32.totalorder %s24, 1
      %p134 = por %p132, %p133
      %p136 = scmp.ne.s32.totalorder %s121, %s135
      %p137 = scmp.eq.s32.totalorder %s24, 0
      %p138 = por %p136, %p137
      %s140 = sadd.s32 %s139, 1
      %p143 = scmp.eq.s32.totalorder %s18, 1
      %p144 = scmp.ne.s32.totalorder %s139, %s141
      %p145 = scmp.eq.s32.totalorder %s18, 0
      %p146 = por %p144, %p145
      %p147 = scmp.ne.s32.totalorder %s139, %s141
      %p148 = scmp.eq.s32.totalorder %s23, 1
      %p149 = por %p147, %p148
      %p150 = scmp.ne.s32.totalorder %s141, %s142
      %p151 = scmp.eq.s32.totalorder %s23, 0
      %p152 = por %p150, %p151
      %p153 = scmp.ne.s32.totalorder %s141, %s142
      %p154 = scmp.eq.s32.totalorder %s24, 1
      %p155 = por %p153, %p154
      %p157 = scmp.ne.s32.totalorder %s142, %s156
      %p158 = scmp.eq.s32.totalorder %s24, 0
      %p159 = por %p157, %p158
      %s160 = ssub.s32 %s25, %s37
      %s161 = ssub.s32 %s26, %s33
      %s162 = sor.u32 %s160, %s161
      %p163 = scmp.eq.s32.totalorder %s162, 0
      %s165 = sadd.s32 %s164, 1
      %s166 = scalar_select %p163, %s164, %s165
      %p169 = pneg %p163
      %p170 = scmp.eq.s32.totalorder %s18, 1
      %p171 = por %p169, %p170
      %p172 = scmp.ne.s32.totalorder %s164, %s167
      %p173 = scmp.eq.s32.totalorder %s18, 0
      %p174 = por %p172, %p173
      %p175 = scmp.ne.s32.totalorder %s164, %s167
      %p176 = scmp.eq.s32.totalorder %s23, 1
      %p177 = por %p175, %p176
      %p178 = scmp.ne.s32.totalorder %s167, %s168
      %p179 = scmp.eq.s32.totalorder %s23, 0
      %p180 = por %p178, %p179
      %p181 = scmp.ne.s32.totalorder %s167, %s168
      %p182 = scmp.eq.s32.totalorder %s24, 1
      %p183 = por %p181, %p182
      %p185 = scmp.ne.s32.totalorder %s168, %s184
      %p186 = scmp.eq.s32.totalorder %s24, 0
      %p187 = por %p185, %p186
      %p188 = scmp.le.s32.totalorder 1, %s18
      %p189 = scmp.lt.s32.totalorder %s18, 3
      %p190 = pnand %p188, %p189
      %p191 = pneg %p190
      // Predicated region
      $region9: #{tpu_custom_call.1} parent=5 // pred_check
        _
      $region10: #{tpu_custom_call.1} parent=5 // pred_check_branch
        %193 = sbr.rel (%p190) target = $region12
      $region11: #{tpu_custom_call.1} parent=5 // pred_region
        %s194 = ssub.s32 %s18, 1
        // Predicated region
        $region13: #{tpu_custom_call.1} parent=11 // pred_check
          %p195 = pneg %p131
        $region14: #{tpu_custom_call.1} parent=11 // pred_check_branch
          %197 = sbr.rel (%p195) target = $region16
        $region15: #{tpu_custom_call.1} parent=11 // pred_region
          %s199 = ssub.s32 256, 256
          %200 = vsyncadd [#allocation6], %s199
          %s201 = sshll.u32 [#allocation5], 4
          %s202 = int_to_ptr.vmem [resolvable:$true] %s201
          %207 = dma.hbm_to_vmem [thread:$0]  %s3, 256, %s202, [#allocation6], 64, 64, 4
        $region16: #{tpu_custom_call.1} parent=11 // pred_fallthru
          _
        // Predicated region
        $region17: #{tpu_custom_call.1} parent=11 // pred_check
          %p208 = pneg %p152
        $region18: #{tpu_custom_call.1} parent=11 // pred_check_branch
          %210 = sbr.rel (%p208) target = $region20
        $region19: #{tpu_custom_call.1} parent=11 // pred_region
          _
        $region20: #{tpu_custom_call.1} parent=11 // pred_fallthru
          _
      $region12: #{tpu_custom_call.1} parent=5 // pred_fallthru
        _
      %p211 = scmp.lt.s32.totalorder %s18, 2
      // Predicated region
      $region21: #{tpu_custom_call.1} parent=5 // pred_check
        %p212 = pneg %p211
      $region22: #{tpu_custom_call.1} parent=5 // pred_check_branch
        %214 = sbr.rel (%p212) target = $region24
      $region23: #{tpu_custom_call.1} parent=5 // pred_region
        // Predicated region
        $region25: #{tpu_custom_call.1} parent=23 // pred_check
          %p215 = pneg %p52
        $region26: #{tpu_custom_call.1} parent=23 // pred_check_branch
          %217 = sbr.rel (%p215) target = $region28
        $region27: #{tpu_custom_call.1} parent=23 // pred_region
          %s218 = sand.u32 %s42, 1
          %s219 = scalar_lea.sflag [#allocation3], %s218
          %s220 = sand.u32 %s42, 1
          %s221 = smul.addr %s220, 4
          %s222 = scalar_lea.vmem [#allocation2], %s221
          %s224 = ssub.s32 64, 64
          %225 = vsyncadd %s219, %s224
          %s226 = sadd.s32 %s26, %s25
          %s227 = smul.addr %s226, 64
          %s228 = scalar_lea.hbm %s0, %s227
          %s230 = sshll.u32 %s222, 4
          %s231 = int_to_ptr.vmem [resolvable:$true] %s230
          %233 = dma.hbm_to_vmem [thread:$0]  %s228, 64, %s231, %s219
        $region28: #{tpu_custom_call.1} parent=23 // pred_fallthru
          _
        // Predicated region
        $region29: #{tpu_custom_call.1} parent=23 // pred_check
          %p234 = pneg %p78
        $region30: #{tpu_custom_call.1} parent=23 // pred_check_branch
          %236 = sbr.rel (%p234) target = $region32
        $region31: #{tpu_custom_call.1} parent=23 // pred_region
          %p237 = scmp.lt.s32.totalorder %s25, 1
          %s238 = scalar_select %p237, %s25, 1
          %s239 = scalar_lea.vmem %s1, %s238
        $region32: #{tpu_custom_call.1} parent=23 // pred_fallthru
          _
        // Predicated region
        $region33: #{tpu_custom_call.1} parent=23 // pred_check
          %p240 = pneg %p104
        $region34: #{tpu_custom_call.1} parent=23 // pred_check_branch
          %242 = sbr.rel (%p240) target = $region36
        $region35: #{tpu_custom_call.1} parent=23 // pred_region
          %p243 = scmp.lt.s32.totalorder %s25, 1
          %s244 = scalar_select %p243, %s25, 1
          %s245 = scalar_lea.vmem %s2, %s244
        $region36: #{tpu_custom_call.1} parent=23 // pred_fallthru
          _
      $region24: #{tpu_custom_call.1} parent=5 // pred_fallthru
        _
      %p246 = scmp.le.s32.totalorder 1, %s18
      %p247 = scmp.lt.s32.totalorder %s18, 3
      %p248 = pnand %p246, %p247
      %p249 = pneg %p248
      // Predicated region
      $region37: #{tpu_custom_call.1} parent=5 // pred_check
        _
      $region38: #{tpu_custom_call.1} parent=5 // pred_check_branch
        %251 = sbr.rel (%p248) target = $region40
      $region39: #{tpu_custom_call.1} parent=5 // pred_region
        %s252 = ssub.s32 %s18, 1
        %s253 = sand.u32 %s45, 1
        %s254 = scalar_lea.sflag [#allocation3], %s253
        %s255 = sand.u32 %s45, 1
        %s256 = smul.addr %s255, 4
        %s257 = scalar_lea.vmem [#allocation2], %s256
        // Predicated region
        $region41: #{tpu_custom_call.1} parent=39 // pred_check
          %p258 = pneg %p58
        $region42: #{tpu_custom_call.1} parent=39 // pred_check_branch
          %260 = sbr.rel (%p258) target = $region44
        $region43: #{tpu_custom_call.1} parent=39 // pred_region
          %261 = dma.done %s254, 64
        $region44: #{tpu_custom_call.1} parent=39 // pred_fallthru
          _
        // Predicated region
        $region45: #{tpu_custom_call.1} parent=39 // pred_check
          %p262 = pneg %p131
        $region46: #{tpu_custom_call.1} parent=39 // pred_check_branch
          %264 = sbr.rel (%p262) target = $region48
        $region47: #{tpu_custom_call.1} parent=39 // pred_region
          %265 = dma.done [#allocation6], 256
        $region48: #{tpu_custom_call.1} parent=39 // pred_fallthru
          _
        %s266 = sand.u32 %s45, 1
        %s267 = scalar_lea.sflag [#allocation3], %s266
        %s268 = sand.u32 %s45, 1
        %s269 = smul.addr %s268, 4
        %s270 = scalar_lea.vmem [#allocation2], %s269
        %p271 = pneg %p58
        %p272 = pneg %p55
        %p273 = scmp.lt.s32.totalorder %s27, 1
        %s274 = scalar_select %p273, %s27, 1
        %s275 = scalar_lea.vmem %s1, %s274
        %p276 = pneg %p84
        %p277 = pneg %p81
        %p278 = scmp.lt.s32.totalorder %s27, 1
        %s279 = scalar_select %p278, %s27, 1
        %s280 = scalar_lea.vmem %s2, %s279
        %p281 = pneg %p110
        %p282 = pneg %p107
        %p283 = pneg %p131
        %p284 = pneg %p128
        %p285 = pneg %p152
        %p286 = pneg %p149
        %p287 = pneg %p180
        %p288 = pneg %p177
        %s289 = sand.u32 %s167, 1
        %s290 = scalar_lea.sflag [#allocation4], %s289
        %s291 = sand.u32 %s167, 1
        %s292 = smul.addr %s291, 4
        %s293 = scalar_lea.vmem [#allocation7], %s292
        %p294 = scmp.lt.s32.totalorder %s27, 1
        %s295 = scalar_select %p294, %s27, 1
        %s296 = scalar_lea.vmem %s1, %s295
        %p297 = scmp.lt.s32.totalorder %s27, 1
        %s298 = scalar_select %p297, %s27, 1
        %s299 = scalar_lea.vmem %s2, %s298
        %v301 = vld [vmem:[%s257] sm:$0xf]
        %v302 = vunpack.c.l.bf16 %v301
        %vm303 = vcmask 261120
        %v304 = vsel %vm303, %v302, 0.0
        %305 = vadd.xlane.f32.xlu0 %v304
        %v306 = vpop.xlane.xlu0 %305
        %v307 = vrcp.pop 32.0
        %v308 = vmul.f32 %v306, %v307
        %v309 = vsub.f32 %v302, %v308
        %v310 = vmul.f32 %v309, %v309
        %v311 = vsel %vm303, %v310, 0.0
        %312 = vadd.xlane.f32.xlu0 %v311
        %v313 = vpop.xlane.xlu0 %312
        %v314 = vmul.f32 %v313, %v307
        %v315 = vadd.f32 %v314, 1e-06
        %v316 = vrsqrt.pop %v315
        %v317 = vmul.f32 %v309, %v316
        %v318 = vld [vmem:[%s299] sm:$0x1]
        %v320 = vlaneseq
        %v321 = vshrl.u32 %v320, 7
        %v322 = vsub.s32 0, %v321
        %v323 = vrot.slane %v318, %v322
        %v325 = vmul.f32 %v317, %v323
        %v326 = vld [vmem:[%s296] sm:$0x1]
        %v328 = vlaneseq
        %v329 = vshrl.u32 %v328, 7
        %v330 = vsub.s32 0, %v329
        %v331 = vrot.slane %v326, %v330
        %v333 = vadd.f32 %v325, %v331
        %v334 = vpack.c.bf16 %v333, %v333
        %v335 = vld [vmem:[#allocation5] sm:$0xf]
        %v336 = vld [vmem:[#allocation5 + $0x4] sm:$0xf]
        %v337 = vld [vmem:[#allocation5 + $0x8] sm:$0xf]
        %v338 = vld [vmem:[#allocation5 + $0xc] sm:$0xf]
        %v339 = vld [vmem:[%s4] sm:$0x1]
        %v341 = vlaneseq
        %v342 = vshrl.u32 %v341, 7
        %v343 = vsub.s32 0, %v342
        %v344 = vrot.slane %v339, %v343
        %v350 = vunpack.c.l.b16 %v335
        %v351 = vunpack.c.l.b16 %v336
        %v352 = vunpack.c.l.b16 %v337
        %v353 = vunpack.c.l.b16 %v338
        %v354 = vpack.c.b16 %v351, %v350
        %v355 = vpack.c.b16 %v353, %v352
        %v359 = vsel %vm303, %v334, 0
        %361 = vmatprep.subr.bf16.mxu0 0
        %362 = vmatpush1.bf16.msra.mxu0 %v354
        %363 = vmatprep.subr.bf16.mxu0 0
        %364 = vmatpush1.bf16.msra.mxu0 %v355
        %365 = vmatprep.subr.bf16.mxu0 0
        %366 = vmatpush1.bf16.msra.mxu0 0
        %367 = vmatprep.subr.bf16.mxu0 0
        %368 = vmatpush1.bf16.msra.mxu0 0
        %369 = vmatprep.subr.bf16.mxu0 0
        %370 = vmatpush1.bf16.msra.mxu0 0
        %371 = vmatprep.subr.bf16.mxu0 0
        %372 = vmatpush1.bf16.msra.mxu0 0
        %373 = vmatprep.subr.bf16.mxu0 0
        %374 = vmatpush1.bf16.msra.mxu0 0
        %375 = vmatprep.subr.bf16.mxu0 0
        %376 = vmatpush1.bf16.msra.mxu0 0
        %377 = vmatprep.subr.bf16.mxu0 0
        %378 = vmatpush1.bf16.msra.mxu0 0
        %379 = vmatprep.subr.bf16.mxu0 0
        %380 = vmatpush1.bf16.msra.mxu0 0
        %381 = vmatprep.subr.bf16.mxu0 0
        %382 = vmatpush1.bf16.msra.mxu0 0
        %383 = vmatprep.subr.bf16.mxu0 0
        %384 = vmatpush1.bf16.msra.mxu0 0
        %385 = vmatprep.subr.bf16.mxu0 0
        %386 = vmatpush1.bf16.msra.mxu0 0
        %387 = vmatprep.subr.bf16.mxu0 0
        %388 = vmatpush1.bf16.msra.mxu0 0
        %389 = vmatprep.subr.bf16.mxu0 0
        %390 = vmatpush1.bf16.msra.mxu0 0
        %391 = vmatprep.subr.bf16.mxu0 0
        %392 = vmatpush1.bf16.msra.mxu0 0
        %393 = vmatprep.mubr.bf16.mxu0 0
        %394 = vmatmul.mubr.bf16.gmra.mrb[0].mxu0 %v359
        %v395 = vpop.f32.mrb[0].mxu0
        %v396 = vadd.f32 %v344, %v395
        %v397 = vpop.f32.mrb[0].mxu0
        %v398 = vpop.f32.mrb[0].mxu0
        %v399 = vpop.f32.mrb[0].mxu0
        %400 = vdwg.mxu0
        %v401 = vpack.c.bf16 %v396, %v396
        %vm402 = vcmask 257024
        %403 = vst.msk [vmem:[%s293] sm:$0xf] %vm402, %v401
        %s404 = sand.u32 %s167, 1
        %s405 = scalar_lea.sflag [#allocation4], %s404
        %s406 = sand.u32 %s167, 1
        %s407 = smul.addr %s406, 4
        %s408 = scalar_lea.vmem [#allocation7], %s407
        // Predicated region
        $region49: #{tpu_custom_call.1} parent=39 // pred_check
          %p409 = pneg %p177
        $region50: #{tpu_custom_call.1} parent=39 // pred_check_branch
          %411 = sbr.rel (%p409) target = $region52
        $region51: #{tpu_custom_call.1} parent=39 // pred_region
          %s413 = ssub.s32 64, 64
          %414 = vsyncadd %s405, %s413
          %s415 = sadd.s32 %s28, %s27
          %s416 = smul.addr %s415, 64
          %s417 = scalar_lea.hbm %s5, %s416
          %s419 = sshll.u32 %s408, 4
          %s420 = int_to_ptr.vmem [resolvable:$true] %s419
          %422 = dma.vmem_to_hbm [thread:$0]  %s420, 64, %s417, %s405
        $region52: #{tpu_custom_call.1} parent=39 // pred_fallthru
          _
      $region40: #{tpu_custom_call.1} parent=5 // pred_fallthru
        _
      %p423 = scmp.le.s32.totalorder 2, %s18
      // Predicated region
      $region53: #{tpu_custom_call.1} parent=5 // pred_check
        %p424 = pneg %p423
      $region54: #{tpu_custom_call.1} parent=5 // pred_check_branch
        %426 = sbr.rel (%p424) target = $region56
      $region55: #{tpu_custom_call.1} parent=5 // pred_region
        %s427 = ssub.s32 %s18, 2
        // Predicated region
        $region57: #{tpu_custom_call.1} parent=55 // pred_check
          %p428 = pneg %p183
        $region58: #{tpu_custom_call.1} parent=55 // pred_check_branch
          %430 = sbr.rel (%p428) target = $region60
        $region59: #{tpu_custom_call.1} parent=55 // pred_region
          %s431 = sand.u32 %s168, 1
          %s432 = scalar_lea.sflag [#allocation4], %s431
          %s433 = sand.u32 %s168, 1
          %s434 = smul.addr %s433, 4
          %s435 = scalar_lea.vmem [#allocation7], %s434
          %436 = dma.done %s432, 64
        $region60: #{tpu_custom_call.1} parent=55 // pred_fallthru
          _
      $region56: #{tpu_custom_call.1} parent=5 // pred_fallthru
        _
    $region6: #{tpu_custom_call.1} parent=1 // loop_footer
      %s22 = sadd.s32 1, %s18
    $region7: #{tpu_custom_call.1} parent=1 // loop_footer_branch
      %17 = sbr.rel target = $region3
    $region8: #{tpu_custom_call.1} parent=1 // loop_exit
      _
    %437 = vsyncpa [#allocation3], 1
    %s438 = scalar_lea.sflag [#allocation3], 1
    %439 = vsyncpa %s438, 1
    %440 = vsyncpa [#allocation6], 1
    %441 = vsyncpa [#allocation4], 1
    %s442 = scalar_lea.sflag [#allocation4], 1
    %443 = vsyncpa %s442, 1

</llo_original>
